<compile_context>
chip_gen: v5e
topology: v5e:2x2
jax: 0.10.0
libtpu: 0.0.40
codegen_flags: <defaults>
</compile_context>

<pallas_src>
import functools

import numpy as np
import jax
import jax.numpy as jnp
from jax.experimental import pallas as pl
from jax.experimental.pallas import tpu as pltpu


def _lovasz_sym_kernel(gts_ref, err_ref, gt_ref, tri_ref, out_ref,
                       prefix_ref, base_ref, pos_ref, *, p_real, G, TK):
    # gts_ref   : (1, 1)    f32  label sum of this image over the real (unpadded) P
    # err_ref   : (G, TK)   f32  hinge errors, globally sorted descending (G sub-chunks)
    # gt_ref    : (G, TK)   bf16 labels permuted with the same order
    # tri_ref   : (TK, TK)  bf16 host-constant upper-triangular ones (resident)
    # out_ref   : (1, 1)    f32  per-image partial loss (term1 + term2), accumulated over k
    # prefix_ref: (1, 1)    f32  running cumsum(gt) carried across grid steps
    # base_ref  : (G, 1)    f32  per-sub-chunk base offsets (exclusive scan)
    # pos_ref   : (G, TK)   f32  1-indexed within-block positions (built once per image)
    k = pl.program_id(1)

    @pl.when(k == 0)
    def _init():
        out_ref[...] = jnp.zeros_like(out_ref)
        prefix_ref[...] = jnp.zeros_like(prefix_ref)
        rid = jax.lax.broadcasted_iota(jnp.int32, (G, TK), 0)
        cid = jax.lax.broadcasted_iota(jnp.int32, (G, TK), 1)
        pos_ref[...] = (rid * TK + cid + 1).astype(jnp.float32)

    err = err_ref[...]                                  # (G, TK) f32
    gt = gt_ref[...].astype(jnp.float32)                # (G, TK) f32 (exact {0,1})
    gts1 = gts_ref[...]                                 # (1, 1)
    gts2 = jnp.float32(p_real) - gts1                   # label sum of mirrored term

    # Chunk-local inclusive cumsum on the MXU ({0,1} bf16 operands, f32 acc -> exact).
    local = jnp.dot(gt_ref[...], tri_ref[...],
                    preferred_element_type=jnp.float32)        # (G, TK)

    # Cross-sub-chunk exclusive scan of the G sub-chunk sums (last cumsum column,
    # no extra XLU reduce), carried across grid steps via prefix_ref.  G is small
    # and static -> unrolled tiny (1,1) ops.
    sums = local[:, TK - 1:TK]                          # (G, 1)
    run = prefix_ref[...]                               # (1, 1)
    for g in range(G):
        base_ref[pl.ds(g, 1), :] = run
        run = run + sums[g:g + 1, :]
    prefix_ref[...] = run

    q = pos_ref[...] + (k * (G * TK)).astype(jnp.float32)   # global 1-indexed position
    c1 = base_ref[...] + local                          # cumsum(gt) at position q
    c1p = c1 - gt                                       # cumsum(gt) at position q-1

    # lovasz_grad for both symmetric terms.  jaccard(q) = q / union(q), so
    # grad(q) = q/U(q) - (q-1)/U(q-1); formed over a common denominator
    # (2 divides / element).  The max(.,1) guards only ever trigger at the
    # global first column of all-zero / all-one label rows, where the (q-1)
    # numerator is 0 anyway -> no NaN and no special-case select needed.
    A = gts1 + q - c1                                   # union, term 1 (labels = gt)
    Ap = jnp.maximum(gts1 + (q - 1.0) - c1p, 1.0)
    Bc = gts2 + c1                                      # union, term 2 (labels = 1-gt)
    Bp = jnp.maximum(gts2 + c1p, 1.0)
    grad1 = (q * Ap - (q - 1.0) * A) / (A * Ap)
    grad2 = (q * Bp - (q - 1.0) * Bc) / (Bc * Bp)

    # relu(errors) is shared by both symmetric terms (errors are identical).
    contrib = jnp.maximum(err, 0.0) * (grad1 + grad2)
    contrib = jnp.where(q <= jnp.float32(p_real), contrib, 0.0)   # ragged-tail mask
    s = jnp.sum(contrib, axis=1, keepdims=True)         # (G, 1)
    s = jnp.sum(s, axis=0, keepdims=True)               # (1, 1)
    out_ref[...] += s


def symmetric_lovasz_loss(logits, targets, *, chunk=256, subchunks=32):
    """(lovasz_hinge(logits, t) + lovasz_hinge(-logits, 1-t)) / 2, per_image=True."""
    B = logits.shape[0]
    P = int(np.prod(logits.shape[1:]))
    lg = logits.reshape(B, P).astype(jnp.float32)
    tg = targets.reshape(B, P).astype(jnp.float32)

    # Hinge errors; identical for the mirrored (-logits, 1-t) term, so a single
    # B-row sort covers both halves of the symmetric loss.
    errors = 1.0 - lg * (2.0 * tg - 1.0)

    # TODO(synk): descending sort/permutation (torch.sort) has no clean Pallas
    # TPU primitive; done here with one keyed lax.sort (labels as payload).
    neg_sorted, gt_sorted = jax.lax.sort((-errors, tg), dimension=1, num_keys=1)
    err_sorted = -neg_sorted
    gts = jnp.sum(tg, axis=1).reshape(B, 1, 1)          # per-image label sum (real P)

    TK = int(chunk)
    P_pad = ((P + TK - 1) // TK) * TK
    if P_pad != P:
        # Only when P is not a multiple of TK; pad values are irrelevant because
        # the kernel masks every column with q > P.
        pad = P_pad - P
        err_sorted = jnp.pad(err_sorted, ((0, 0), (0, pad)))
        gt_sorted = jnp.pad(gt_sorted, ((0, 0), (0, pad)))
    NC = P_pad // TK                                    # number of TK sub-chunks
    G = min(int(subchunks), NC)                         # sub-chunks folded per step
    n_steps = (NC + G - 1) // G

    err3 = err_sorted.reshape(B, NC, TK)                          # f32
    gt3 = gt_sorted.astype(jnp.bfloat16).reshape(B, NC, TK)       # bf16, exact {0,1}
    tri = jnp.asarray(np.triu(np.ones((TK, TK), np.float32)),
                      dtype=jnp.bfloat16)                         # host-constant

    partial = pl.pallas_call(
        functools.partial(_lovasz_sym_kernel, p_real=P, G=G, TK=TK),
        out_shape=jax.ShapeDtypeStruct((B, 1, 1), jnp.float32),
        grid=(B, n_steps),
        in_specs=[
            pl.BlockSpec((None, 1, 1), lambda b, k: (b, 0, 0)),     # per-image label sum
            pl.BlockSpec((None, G, TK), lambda b, k: (b, k, 0)),    # sorted errors (f32)
            pl.BlockSpec((None, G, TK), lambda b, k: (b, k, 0)),    # sorted labels (bf16)
            pl.BlockSpec((TK, TK), lambda b, k: (0, 0)),            # upper-tri ones (resident)
        ],
        out_specs=pl.BlockSpec((None, 1, 1), lambda b, k: (b, 0, 0)),
        scratch_shapes=[
            pltpu.VMEM((1, 1), jnp.float32),     # running cumsum(gt) prefix
            pltpu.VMEM((G, 1), jnp.float32),     # per-sub-chunk base offsets
            pltpu.VMEM((G, TK), jnp.float32),    # 1-indexed within-block positions
        ],
        compiler_params=pltpu.CompilerParams(
            dimension_semantics=("parallel", "arbitrary"),   # batch splits across TCs (v7x)
            vmem_limit_bytes=32 * 1024 * 1024,
        ),
    )(gts, err3, gt3, tri)

    # (mean_rows(term1) + mean_rows(term2)) / 2 == sum(per-image partials) / (2B)
    return jnp.sum(partial) / (2.0 * B)


# ---------------- pure-JAX reference (sanity check) ----------------
def _ref_lovasz_hinge_flat(logits, labels):
    signs = 2.0 * labels - 1.0
    errors = 1.0 - logits * signs
    order = jnp.argsort(-errors)
    errors_sorted = errors[order]
    gt_sorted = labels[order]
    gts = gt_sorted.sum()
    intersection = gts - jnp.cumsum(gt_sorted)
    union = gts + jnp.cumsum(1.0 - gt_sorted)
    jac = 1.0 - intersection / union
    grad = jnp.concatenate([jac[:1], jac[1:] - jac[:-1]])
    return jnp.dot(jax.nn.relu(errors_sorted), grad)


def _ref_symmetric_lovasz(logits, targets):
    B = logits.shape[0]
    lg = logits.reshape(B, -1).astype(jnp.float32)
    tg = targets.reshape(B, -1).astype(jnp.float32)
    l1 = jnp.mean(jnp.stack([_ref_lovasz_hinge_flat(lg[i], tg[i]) for i in range(B)]))
    l2 = jnp.mean(jnp.stack([_ref_lovasz_hinge_flat(-lg[i], 1.0 - tg[i]) for i in range(B)]))
    return (l1 + l2) / 2.0


if __name__ == "__main__":
    key = jax.random.PRNGKey(0)
    k1, k2 = jax.random.split(key)
    shape = (2, 4, 16, 16)  # [B, C, H, W]; per-image flatten -> P = 4*16*16 = 1024
    logits = jax.random.normal(k1, shape, dtype=jnp.float32)
    targets = (jax.random.uniform(k2, shape) > 0.5).astype(jnp.float32)

    out = jax.block_until_ready(symmetric_lovasz_loss(logits, targets))
    ref = jax.block_until_ready(_ref_symmetric_lovasz(logits, targets))

    assert np.isfinite(float(out))
    assert abs(float(out) - float(ref)) < 1e-3, (float(out), float(ref))

    print("KERNEL_OK")
</pallas_src>

<mosaic_0001>
module attributes {stable_mosaic.version = 11 : i64} {
  func.func @_lovasz_sym_kernel(%arg0: i32, %arg1: i32, %arg2: memref<1x1x1xf32, #tpu.memory_space<vmem>>, %arg3: memref<1x4x256xf32, #tpu.memory_space<vmem>>, %arg4: memref<1x4x256xbf16, #tpu.memory_space<vmem>>, %arg5: memref<256x256xbf16, #tpu.memory_space<vmem>>, %arg6: memref<1x1x1xf32, #tpu.memory_space<vmem>>, %arg7: memref<1x1xf32, #tpu.memory_space<vmem>>, %arg8: memref<4x1xf32, #tpu.memory_space<vmem>>, %arg9: memref<4x256xf32, #tpu.memory_space<vmem>>) attributes {dimension_semantics = [#tpu.dimension_semantics<parallel>, #tpu.dimension_semantics<arbitrary>], iteration_bounds = array<i64: 2, 1>, scalar_prefetch = 0 : i64, scratch_operands = 3 : i64, tpu.core_type = #tpu.core_type<tc>, window_params = [{transform_indices = @transform_0, window_bounds = array<i64: 1, 1, 1>}, {transform_indices = @transform_1, window_bounds = array<i64: 1, 4, 256>}, {transform_indices = @transform_2, window_bounds = array<i64: 1, 4, 256>}, {pipeline_mode = #tpu.pipeline_mode<synchronous>, transform_indices = @transform_3, window_bounds = array<i64: 256, 256>}, {transform_indices = @transform_4, window_bounds = array<i64: 1, 1, 1>}]} {
    %c0_i32 = arith.constant 0 : i32
    %0 = arith.cmpi eq, %arg1, %c0_i32 : i32
    %1 = arith.extui %0 : i1 to i32
    %c0_i32_0 = arith.constant 0 : i32
    %2 = arith.cmpi ne, %1, %c0_i32_0 : i32
    scf.if %2 {
      %cst_44 = arith.constant 0.000000e+00 : f32
      %88 = vector.broadcast %cst_44 : f32 to vector<1x1xf32>
      %c0_45 = arith.constant 0 : index
      %c0_46 = arith.constant 0 : index
      %c0_47 = arith.constant 0 : index
      %89 = vector.load %arg6[%c0_45, %c0_46, %c0_47] : memref<1x1x1xf32, #tpu.memory_space<vmem>>, vector<1x1x1xf32>
      %90 = vector.shape_cast %89 : vector<1x1x1xf32> to vector<1x1xf32>
      %91 = vector.shape_cast %88 : vector<1x1xf32> to vector<1x1x1xf32>
      tpu.vector_store %arg6[%c0_45, %c0_46, %c0_47], %91 {strides = array<i32>} : memref<1x1x1xf32, #tpu.memory_space<vmem>>, vector<1x1x1xf32>,
      %cst_48 = arith.constant 0.000000e+00 : f32
      %92 = vector.broadcast %cst_48 : f32 to vector<1x1xf32>
      %c0_49 = arith.constant 0 : index
      %c0_50 = arith.constant 0 : index
      %93 = vector.load %arg7[%c0_49, %c0_50] : memref<1x1xf32, #tpu.memory_space<vmem>>, vector<1x1xf32>
      tpu.vector_store %arg7[%c0_49, %c0_50], %92 {strides = array<i32>} : memref<1x1xf32, #tpu.memory_space<vmem>>, vector<1x1xf32>,
      %94 = tpu.iota {dimensions = array<i32: 0>} : vector<4x256xi32>
      %95 = tpu.iota {dimensions = array<i32: 1>} : vector<4x256xi32>
      %c256_i32 = arith.constant 256 : i32
      %96 = vector.broadcast %c256_i32 : i32 to vector<4x256xi32>
      %97 = arith.muli %94, %96 : vector<4x256xi32>
      %98 = arith.addi %97, %95 : vector<4x256xi32>
      %c1_i32 = arith.constant 1 : i32
      %99 = vector.broadcast %c1_i32 : i32 to vector<4x256xi32>
      %100 = arith.addi %98, %99 : vector<4x256xi32>
      %101 = arith.sitofp %100 : vector<4x256xi32> to vector<4x256xf32>
      %c0_51 = arith.constant 0 : index
      %c0_52 = arith.constant 0 : index
      %102 = vector.load %arg9[%c0_51, %c0_52] : memref<4x256xf32, #tpu.memory_space<vmem>>, vector<4x256xf32>
      tpu.vector_store %arg9[%c0_51, %c0_52], %101 {strides = array<i32>} : memref<4x256xf32, #tpu.memory_space<vmem>>, vector<4x256xf32>,
    } else {
    }
    %c0 = arith.constant 0 : index
    %c0_1 = arith.constant 0 : index
    %c0_2 = arith.constant 0 : index
    %3 = vector.load %arg3[%c0, %c0_1, %c0_2] : memref<1x4x256xf32, #tpu.memory_space<vmem>>, vector<1x4x256xf32>
    %4 = vector.shape_cast %3 : vector<1x4x256xf32> to vector<4x256xf32>
    %c0_3 = arith.constant 0 : index
    %c0_4 = arith.constant 0 : index
    %c0_5 = arith.constant 0 : index
    %5 = vector.load %arg4[%c0_3, %c0_4, %c0_5] : memref<1x4x256xbf16, #tpu.memory_space<vmem>>, vector<1x4x256xbf16>
    %6 = vector.shape_cast %5 : vector<1x4x256xbf16> to vector<4x256xbf16>
    %7 = arith.extf %6 : vector<4x256xbf16> to vector<4x256xf32>
    %c0_6 = arith.constant 0 : index
    %c0_7 = arith.constant 0 : index
    %c0_8 = arith.constant 0 : index
    %8 = vector.load %arg2[%c0_6, %c0_7, %c0_8] : memref<1x1x1xf32, #tpu.memory_space<vmem>>, vector<1x1x1xf32>
    %9 = vector.shape_cast %8 : vector<1x1x1xf32> to vector<1x1xf32>
    %cst = arith.constant 1.024000e+03 : f32
    %10 = vector.broadcast %cst : f32 to vector<1x1xf32>
    %11 = arith.subf %10, %9 : vector<1x1xf32>
    %c0_9 = arith.constant 0 : index
    %c0_10 = arith.constant 0 : index
    %c0_11 = arith.constant 0 : index
    %12 = vector.load %arg4[%c0_9, %c0_10, %c0_11] : memref<1x4x256xbf16, #tpu.memory_space<vmem>>, vector<1x4x256xbf16>
    %13 = vector.shape_cast %12 : vector<1x4x256xbf16> to vector<4x256xbf16>
    %c0_12 = arith.constant 0 : index
    %c0_13 = arith.constant 0 : index
    %14 = vector.load %arg5[%c0_12, %c0_13] : memref<256x256xbf16, #tpu.memory_space<vmem>>, vector<256x256xbf16>
    %cst_14 = arith.constant dense<0.000000e+00> : vector<4x256xf32>
    %15 = tpu.matmul %13, %14, %cst_14 {dimension_numbers = #tpu.dot_dimension_numbers<[1], [0], [0], [1], [0, 0, 1, 1], [], []>} : vector<4x256xbf16>, vector<256x256xbf16>, vector<4x256xf32> -> vector<4x256xf32>
    %16 = vector.extract_strided_slice %15 {offsets = [0, 255], sizes = [4, 1], strides = [1, 1]} : vector<4x256xf32> to vector<4x1xf32>
    %c0_15 = arith.constant 0 : index
    %c0_16 = arith.constant 0 : index
    %17 = vector.load %arg7[%c0_15, %c0_16] : memref<1x1xf32, #tpu.memory_space<vmem>>, vector<1x1xf32>
    %c0_17 = arith.constant 0 : index
    %c0_18 = arith.constant 0 : index
    %18 = vector.load %arg8[%c0_17, %c0_18] : memref<4x1xf32, #tpu.memory_space<vmem>>, vector<1x1xf32>
    tpu.vector_store %arg8[%c0_17, %c0_18], %17 {strides = array<i32>} : memref<4x1xf32, #tpu.memory_space<vmem>>, vector<1x1xf32>,
    %19 = vector.extract_strided_slice %16 {offsets = [0, 0], sizes = [1, 1], strides = [1, 1]} : vector<4x1xf32> to vector<1x1xf32>
    %20 = arith.addf %17, %19 : vector<1x1xf32>
    %c1 = arith.constant 1 : index
    %c0_19 = arith.constant 0 : index
    %21 = vector.load %arg8[%c1, %c0_19] : memref<4x1xf32, #tpu.memory_space<vmem>>, vector<1x1xf32>
    tpu.vector_store %arg8[%c1, %c0_19], %20 {strides = array<i32>} : memref<4x1xf32, #tpu.memory_space<vmem>>, vector<1x1xf32>,
    %22 = vector.extract_strided_slice %16 {offsets = [1, 0], sizes = [1, 1], strides = [1, 1]} : vector<4x1xf32> to vector<1x1xf32>
    %23 = arith.addf %20, %22 : vector<1x1xf32>
    %c2 = arith.constant 2 : index
    %c0_20 = arith.constant 0 : index
    %24 = vector.load %arg8[%c2, %c0_20] : memref<4x1xf32, #tpu.memory_space<vmem>>, vector<1x1xf32>
    tpu.vector_store %arg8[%c2, %c0_20], %23 {strides = array<i32>} : memref<4x1xf32, #tpu.memory_space<vmem>>, vector<1x1xf32>,
    %25 = vector.extract_strided_slice %16 {offsets = [2, 0], sizes = [1, 1], strides = [1, 1]} : vector<4x1xf32> to vector<1x1xf32>
    %26 = arith.addf %23, %25 : vector<1x1xf32>
    %c3 = arith.constant 3 : index
    %c0_21 = arith.constant 0 : index
    %27 = vector.load %arg8[%c3, %c0_21] : memref<4x1xf32, #tpu.memory_space<vmem>>, vector<1x1xf32>
    tpu.vector_store %arg8[%c3, %c0_21], %26 {strides = array<i32>} : memref<4x1xf32, #tpu.memory_space<vmem>>, vector<1x1xf32>,
    %28 = vector.extract_strided_slice %16 {offsets = [3, 0], sizes = [1, 1], strides = [1, 1]} : vector<4x1xf32> to vector<1x1xf32>
    %29 = arith.addf %26, %28 : vector<1x1xf32>
    %c0_22 = arith.constant 0 : index
    %c0_23 = arith.constant 0 : index
    %30 = vector.load %arg7[%c0_22, %c0_23] : memref<1x1xf32, #tpu.memory_space<vmem>>, vector<1x1xf32>
    tpu.vector_store %arg7[%c0_22, %c0_23], %29 {strides = array<i32>} : memref<1x1xf32, #tpu.memory_space<vmem>>, vector<1x1xf32>,
    %c0_24 = arith.constant 0 : index
    %c0_25 = arith.constant 0 : index
    %31 = vector.load %arg9[%c0_24, %c0_25] : memref<4x256xf32, #tpu.memory_space<vmem>>, vector<4x256xf32>
    %c1024_i32 = arith.constant 1024 : i32
    %32 = arith.muli %arg1, %c1024_i32 : i32
    %33 = arith.sitofp %32 : i32 to f32
    %34 = vector.broadcast %33 : f32 to vector<4x256xf32>
    %35 = arith.addf %31, %34 : vector<4x256xf32>
    %c0_26 = arith.constant 0 : index
    %c0_27 = arith.constant 0 : index
    %36 = vector.load %arg8[%c0_26, %c0_27] : memref<4x1xf32, #tpu.memory_space<vmem>>, vector<4x1xf32>
    %37 = vector.broadcast %36 : vector<4x1xf32> to vector<4x256xf32>
    %38 = arith.addf %37, %15 : vector<4x256xf32>
    %39 = arith.subf %38, %7 : vector<4x256xf32>
    %40 = vector.broadcast %9 : vector<1x1xf32> to vector<4x256xf32>
    %41 = arith.addf %40, %35 : vector<4x256xf32>
    %42 = arith.subf %41, %38 : vector<4x256xf32>
    %cst_28 = arith.constant 1.000000e+00 : f32
    %43 = vector.broadcast %cst_28 : f32 to vector<4x256xf32>
    %44 = arith.subf %35, %43 : vector<4x256xf32>
    %45 = vector.broadcast %9 : vector<1x1xf32> to vector<4x256xf32>
    %46 = arith.addf %45, %44 : vector<4x256xf32>
    %47 = arith.subf %46, %39 : vector<4x256xf32>
    %cst_29 = arith.constant 1.000000e+00 : f32
    %48 = vector.broadcast %cst_29 : f32 to vector<4x256xf32>
    %49 = arith.maximumf %47, %48 : vector<4x256xf32>
    %50 = vector.broadcast %11 : vector<1x1xf32> to vector<4x256xf32>
    %51 = arith.addf %50, %38 : vector<4x256xf32>
    %52 = vector.broadcast %11 : vector<1x1xf32> to vector<4x256xf32>
    %53 = arith.addf %52, %39 : vector<4x256xf32>
    %cst_30 = arith.constant 1.000000e+00 : f32
    %54 = vector.broadcast %cst_30 : f32 to vector<4x256xf32>
    %55 = arith.maximumf %53, %54 : vector<4x256xf32>
    %56 = arith.mulf %35, %49 : vector<4x256xf32>
    %cst_31 = arith.constant 1.000000e+00 : f32
    %57 = vector.broadcast %cst_31 : f32 to vector<4x256xf32>
    %58 = arith.subf %35, %57 : vector<4x256xf32>
    %59 = arith.mulf %58, %42 : vector<4x256xf32>
    %60 = arith.subf %56, %59 : vector<4x256xf32>
    %61 = arith.mulf %42, %49 : vector<4x256xf32>
    %62 = arith.divf %60, %61 : vector<4x256xf32>
    %63 = arith.mulf %35, %55 : vector<4x256xf32>
    %cst_32 = arith.constant 1.000000e+00 : f32
    %64 = vector.broadcast %cst_32 : f32 to vector<4x256xf32>
    %65 = arith.subf %35, %64 : vector<4x256xf32>
    %66 = arith.mulf %65, %51 : vector<4x256xf32>
    %67 = arith.subf %63, %66 : vector<4x256xf32>
    %68 = arith.mulf %51, %55 : vector<4x256xf32>
    %69 = arith.divf %67, %68 : vector<4x256xf32>
    %cst_33 = arith.constant 0.000000e+00 : f32
    %70 = vector.broadcast %cst_33 : f32 to vector<4x256xf32>
    %71 = arith.maximumf %4, %70 : vector<4x256xf32>
    %72 = arith.addf %62, %69 : vector<4x256xf32>
    %73 = arith.mulf %71, %72 : vector<4x256xf32>
    %cst_34 = arith.constant 1.024000e+03 : f32
    %74 = vector.broadcast %cst_34 : f32 to vector<4x256xf32>
    %75 = arith.cmpf ole, %35, %74 : vector<4x256xf32>
    %cst_35 = arith.constant 0.000000e+00 : f32
    %76 = vector.broadcast %cst_35 : f32 to vector<4x256xf32>
    %77 = arith.select %75, %73, %76 : vector<4x256xi1>, vector<4x256xf32>
    %cst_36 = arith.constant dense<0.000000e+00> : vector<4xf32>
    %78 = vector.multi_reduction <add>, %77, %cst_36 [1] : vector<4x256xf32> to vector<4xf32>
    %79 = vector.shape_cast %78 : vector<4xf32> to vector<4x1xf32>
    %cst_37 = arith.constant dense<0.000000e+00> : vector<1xf32>
    %80 = vector.multi_reduction <add>, %79, %cst_37 [0] : vector<4x1xf32> to vector<1xf32>
    %81 = vector.shape_cast %80 : vector<1xf32> to vector<1x1xf32>
    %c0_38 = arith.constant 0 : index
    %c0_39 = arith.constant 0 : index
    %c0_40 = arith.constant 0 : index
    %82 = vector.load %arg6[%c0_38, %c0_39, %c0_40] : memref<1x1x1xf32, #tpu.memory_space<vmem>>, vector<1x1x1xf32>
    %83 = vector.shape_cast %82 : vector<1x1x1xf32> to vector<1x1xf32>
    %84 = arith.addf %83, %81 : vector<1x1xf32>
    %c0_41 = arith.constant 0 : index
    %c0_42 = arith.constant 0 : index
    %c0_43 = arith.constant 0 : index
    %85 = vector.load %arg6[%c0_41, %c0_42, %c0_43] : memref<1x1x1xf32, #tpu.memory_space<vmem>>, vector<1x1x1xf32>
    %86 = vector.shape_cast %85 : vector<1x1x1xf32> to vector<1x1xf32>
    %87 = vector.shape_cast %84 : vector<1x1xf32> to vector<1x1x1xf32>
    tpu.vector_store %arg6[%c0_41, %c0_42, %c0_43], %87 {strides = array<i32>} : memref<1x1x1xf32, #tpu.memory_space<vmem>>, vector<1x1x1xf32>,
    return
  }
  func.func @transform_0(%arg0: i32, %arg1: i32) -> (i32, i32, i32) {
    %c0_i32 = arith.constant 0 : i32
    %c0_i32_0 = arith.constant 0 : i32
    %c0_i32_1 = arith.constant 0 : i32
    return %arg0, %c0_i32, %c0_i32_0 : i32, i32, i32
  }
  func.func @transform_1(%arg0: i32, %arg1: i32) -> (i32, i32, i32) {
    %c0_i32 = arith.constant 0 : i32
    %c0_i32_0 = arith.constant 0 : i32
    return %arg0, %arg1, %c0_i32 : i32, i32, i32
  }
  func.func @transform_2(%arg0: i32, %arg1: i32) -> (i32, i32, i32) {
    %c0_i32 = arith.constant 0 : i32
    %c0_i32_0 = arith.constant 0 : i32
    return %arg0, %arg1, %c0_i32 : i32, i32, i32
  }
  func.func @transform_3(%arg0: i32, %arg1: i32) -> (i32, i32) {
    %c0_i32 = arith.constant 0 : i32
    %c0_i32_0 = arith.constant 0 : i32
    %c0_i32_1 = arith.constant 0 : i32
    return %c0_i32, %c0_i32_0 : i32, i32
  }
  func.func @transform_4(%arg0: i32, %arg1: i32) -> (i32, i32, i32) {
    %c0_i32 = arith.constant 0 : i32
    %c0_i32_0 = arith.constant 0 : i32
    %c0_i32_1 = arith.constant 0 : i32
    return %arg0, %c0_i32, %c0_i32_0 : i32, i32, i32
  }
}

</mosaic_0001>

<llo_original>
// kernel: tpu_custom_call.1
$region0: #{tpu_custom_call.1}
  #allocation0 [shape = 'u32[]', space=smem, size = 0x4, offset = 0x4, fixed_abs, tag = 'smem constant byte address 0x4 - core index']
  #allocation1 [shape = 'u32[72,128]{1,0:T(1,128)}', space=vmem, size = 0x9000, scoped, tag = 'internal scratch']
  #allocation2 [shape = 'f32[1,1]{1,0:T(1,128)}', space=vmem, size = 0x200, scoped, tag = 'scratch operand']
  #allocation3 [shape = 'f32[4,1]{1,0:T(4,128)}', space=vmem, size = 0x800, scoped, tag = 'scratch operand']
  #allocation4 [shape = 'f32[4,256]{1,0:T(4,128)}', space=vmem, size = 0x1000, scoped, tag = 'scratch operand']
  %s0 = inlined_call_operand.vmem [shape: f32[2,1,1], index: 0, kind: input, shape index: {}]
  %s1 = inlined_call_operand.hbm [shape: f32[2,4,256], index: 1, kind: input, shape index: {}]
  %s2 = inlined_call_operand.hbm [shape: bf16[2,4,256], index: 2, kind: input, shape index: {}]
  %s3 = inlined_call_operand.hbm [shape: bf16[256,256], index: 3, kind: input, shape index: {}]
  %s4 = inlined_call_operand.vmem [shape: f32[2,1,1], index: 4, kind: output, shape index: {}]
  %s5 = sld [smem:[#allocation0]]
  $region65: #{tpu_custom_call.1} parent=0
    _
  %s7 = ssub.s32 1, %s5
  %s8 = scalar_select 0, %s7, %s5
  $region1: #{tpu_custom_call.1} parent=0
    #allocation5 [shape = 'u8[8192]{0}', space=vmem, size = 0x2000, scoped, tag = 'input window, operand 1']
    #allocation6 [shape = 's32[2]{0}', space=sflag, size = 0x8, scoped, tag = 'scoped memory for tpu_custom_call.1']
    #allocation7 [shape = 'u8[4096]{0}', space=vmem, size = 0x1000, scoped, tag = 'input window, operand 2']
    #allocation8 [shape = 's32[2]{0}', space=sflag, size = 0x8, scoped, tag = 'scoped memory for tpu_custom_call.1']
    #allocation9 [shape = 'u8[131072]{0}', space=vmem, size = 0x20000, scoped, tag = 'input window, operand 3, single buffered']
    %9 = vsyncpa [#allocation6], 0
    %s10 = scalar_lea.sflag [#allocation6], 1
    %11 = vsyncpa %s10, 0
    %12 = vsyncpa [#allocation8], 0
    %s13 = scalar_lea.sflag [#allocation8], 1
    %14 = vsyncpa %s13, 0
    loop: start=0, step=1, limit=4
    $region2: #{tpu_custom_call.1} parent=1 // loop_pre_header
      _
    $region3: #{tpu_custom_call.1} parent=1 // loop_header
      %s16 = sphi 0, %s20
      %p17 = scmp.ge.s32.totalorder %s16, 4
      %s23 = sphi 0, %s35
      %s24 = sphi 0, %s31
      %s25 = sphi 0, %s23
      %s26 = sphi 0, %s24
      %s27 = sphi 0, %s25
      %s28 = sphi 0, %s26
      %s38 = sphi 0, %s40
      %s41 = sphi 0, %s38
      %s42 = sphi 0, %s41
      %s58 = sphi 0, %s42
      %s66 = sphi 0, %s68
      %s69 = sphi 0, %s66
      %s70 = sphi 0, %s69
      %s86 = sphi 0, %s70
      %s94 = sphi 0, %s96
      %s97 = sphi 0, %s94
      %s98 = sphi 0, %s97
      %s114 = sphi 0, %s98
      %s118 = sphi 0, %s118
      %s120 = sphi 0, %s118
      %s121 = sphi 0, %s120
      %s135 = sphi 0, %s121
      %s141 = sphi 0, %s143
      %s144 = sphi 0, %s141
      %s145 = sphi 0, %s144
      %s161 = sphi 0, %s145
    $region4: #{tpu_custom_call.1} parent=1 // loop_header_branch
      %19 = sbr.rel (%p17) target = $region8
    $region5: #{tpu_custom_call.1} parent=1 // loop_body
      %s21 = ssub.s32 %s16, 1
      %s22 = ssub.s32 %s16, 2
      %s29 = sadd.s32 1, %s24
      %p30 = scmp.ge.s32.totalorder %s29, 1
      %s31 = scalar_select %p30, 0, %s29
      %s32 = sadd.s32 1, %s23
      %s33 = scalar_select %p30, %s32, %s23
      %p34 = scmp.ge.s32.totalorder %s33, 2
      %s35 = scalar_select %p34, 0, %s33
      %s36 = ssub.s32 %s23, %s35
      %p37 = scmp.eq.s32.totalorder %s36, 0
      %s39 = sadd.s32 %s38, 1
      %s40 = scalar_select %p37, %s38, %s39
      %p43 = pneg %p37
      %p44 = scmp.eq.s32.totalorder %s16, 1
      %p45 = por %p43, %p44
      %p46 = scmp.ne.s32.totalorder %s38, %s41
      %p47 = scmp.eq.s32.totalorder %s16, 0
      %p48 = por %p46, %p47
      %p49 = scmp.ne.s32.totalorder %s38, %s41
      %p50 = scmp.eq.s32.totalorder %s21, 1
      %p51 = por %p49, %p50
      %p52 = scmp.ne.s32.totalorder %s41, %s42
      %p53 = scmp.eq.s32.totalorder %s21, 0
      %p54 = por %p52, %p53
      %p55 = scmp.ne.s32.totalorder %s41, %s42
      %p56 = scmp.eq.s32.totalorder %s22, 1
      %p57 = por %p55, %p56
      %p59 = scmp.ne.s32.totalorder %s42, %s58
      %p60 = scmp.eq.s32.totalorder %s22, 0
      %p61 = por %p59, %p60
      %s62 = ssub.s32 %s23, %s35
      %s63 = ssub.s32 %s24, %s31
      %s64 = sor.u32 %s62, %s63
      %p65 = scmp.eq.s32.totalorder %s64, 0
      %s67 = sadd.s32 %s66, 1
      %s68 = scalar_select %p65, %s66, %s67
      %p71 = pneg %p65
      %p72 = scmp.eq.s32.totalorder %s16, 1
      %p73 = por %p71, %p72
      %p74 = scmp.ne.s32.totalorder %s66, %s69
      %p75 = scmp.eq.s32.totalorder %s16, 0
      %p76 = por %p74, %p75
      %p77 = scmp.ne.s32.totalorder %s66, %s69
      %p78 = scmp.eq.s32.totalorder %s21, 1
      %p79 = por %p77, %p78
      %p80 = scmp.ne.s32.totalorder %s69, %s70
      %p81 = scmp.eq.s32.totalorder %s21, 0
      %p82 = por %p80, %p81
      %p83 = scmp.ne.s32.totalorder %s69, %s70
      %p84 = scmp.eq.s32.totalorder %s22, 1
      %p85 = por %p83, %p84
      %p87 = scmp.ne.s32.totalorder %s70, %s86
      %p88 = scmp.eq.s32.totalorder %s22, 0
      %p89 = por %p87, %p88
      %s90 = ssub.s32 %s23, %s35
      %s91 = ssub.s32 %s24, %s31
      %s92 = sor.u32 %s90, %s91
      %p93 = scmp.eq.s32.totalorder %s92, 0
      %s95 = sadd.s32 %s94, 1
      %s96 = scalar_select %p93, %s94, %s95
      %p99 = pneg %p93
      %p100 = scmp.eq.s32.totalorder %s16, 1
      %p101 = por %p99, %p100
      %p102 = scmp.ne.s32.totalorder %s94, %s97
      %p103 = scmp.eq.s32.totalorder %s16, 0
      %p104 = por %p102, %p103
      %p105 = scmp.ne.s32.totalorder %s94, %s97
      %p106 = scmp.eq.s32.totalorder %s21, 1
      %p107 = por %p105, %p106
      %p108 = scmp.ne.s32.totalorder %s97, %s98
      %p109 = scmp.eq.s32.totalorder %s21, 0
      %p110 = por %p108, %p109
      %p111 = scmp.ne.s32.totalorder %s97, %s98
      %p112 = scmp.eq.s32.totalorder %s22, 1
      %p113 = por %p111, %p112
      %p115 = scmp.ne.s32.totalorder %s98, %s114
      %p116 = scmp.eq.s32.totalorder %s22, 0
      %p117 = por %p115, %p116
      %s119 = sadd.s32 %s118, 1
      %p122 = scmp.eq.s32.totalorder %s16, 1
      %p123 = scmp.ne.s32.totalorder %s118, %s120
      %p124 = scmp.eq.s32.totalorder %s16, 0
      %p125 = por %p123, %p124
      %p126 = scmp.ne.s32.totalorder %s118, %s120
      %p127 = scmp.eq.s32.totalorder %s21, 1
      %p128 = por %p126, %p127
      %p129 = scmp.ne.s32.totalorder %s120, %s121
      %p130 = scmp.eq.s32.totalorder %s21, 0
      %p131 = por %p129, %p130
      %p132 = scmp.ne.s32.totalorder %s120, %s121
      %p133 = scmp.eq.s32.totalorder %s22, 1
      %p134 = por %p132, %p133
      %p136 = scmp.ne.s32.totalorder %s121, %s135
      %p137 = scmp.eq.s32.totalorder %s22, 0
      %p138 = por %p136, %p137
      %s139 = ssub.s32 %s23, %s35
      %p140 = scmp.eq.s32.totalorder %s139, 0
      %s142 = sadd.s32 %s141, 1
      %s143 = scalar_select %p140, %s141, %s142
      %p146 = pneg %p140
      %p147 = scmp.eq.s32.totalorder %s16, 1
      %p148 = por %p146, %p147
      %p149 = scmp.ne.s32.totalorder %s141, %s144
      %p150 = scmp.eq.s32.totalorder %s16, 0
      %p151 = por %p149, %p150
      %p152 = scmp.ne.s32.totalorder %s141, %s144
      %p153 = scmp.eq.s32.totalorder %s21, 1
      %p154 = por %p152, %p153
      %p155 = scmp.ne.s32.totalorder %s144, %s145
      %p156 = scmp.eq.s32.totalorder %s21, 0
      %p157 = por %p155, %p156
      %p158 = scmp.ne.s32.totalorder %s144, %s145
      %p159 = scmp.eq.s32.totalorder %s22, 1
      %p160 = por %p158, %p159
      %p162 = scmp.ne.s32.totalorder %s145, %s161
      %p163 = scmp.eq.s32.totalorder %s22, 0
      %p164 = por %p162, %p163
      %p165 = scmp.le.s32.totalorder 1, %s16
      %p166 = scmp.lt.s32.totalorder %s16, 3
      %p167 = pnand %p165, %p166
      %p168 = pneg %p167
      // Predicated region
      $region9: #{tpu_custom_call.1} parent=5 // pred_check
        _
      $region10: #{tpu_custom_call.1} parent=5 // pred_check_branch
        %170 = sbr.rel (%p167) target = $region12
      $region11: #{tpu_custom_call.1} parent=5 // pred_region
        %s171 = ssub.s32 %s16, 1
        // Predicated region
        $region13: #{tpu_custom_call.1} parent=11 // pred_check
          %p172 = pneg %p131
        $region14: #{tpu_custom_call.1} parent=11 // pred_check_branch
          %174 = sbr.rel (%p172) target = $region16
        $region15: #{tpu_custom_call.1} parent=11 // pred_region
          %176 = vsyncadd [#allocation8], 0
          %s177 = sshll.u32 %s3, 4
          %s178 = int_to_ptr.hbm [resolvable:$true] %s177
          %s179 = sshll.u32 [#allocation9], 4
          %s180 = int_to_ptr.vmem [resolvable:$true] %s179
          %185 = dma.hbm_to_vmem [thread:$0]  %s178, 4096, %s180, [#allocation8], 128, 128, 8
        $region16: #{tpu_custom_call.1} parent=11 // pred_fallthru
          _
      $region12: #{tpu_custom_call.1} parent=5 // pred_fallthru
        _
      %p186 = scmp.lt.s32.totalorder %s16, 2
      // Predicated region
      $region17: #{tpu_custom_call.1} parent=5 // pred_check
        %p187 = pneg %p186
      $region18: #{tpu_custom_call.1} parent=5 // pred_check_branch
        %189 = sbr.rel (%p187) target = $region20
      $region19: #{tpu_custom_call.1} parent=5 // pred_region
        // Predicated region
        $region21: #{tpu_custom_call.1} parent=19 // pred_check
          %p190 = pneg %p48
        $region22: #{tpu_custom_call.1} parent=19 // pred_check_branch
          %192 = sbr.rel (%p190) target = $region24
        $region23: #{tpu_custom_call.1} parent=19 // pred_region
          %p193 = scmp.lt.s32.totalorder %s23, 1
          %s194 = scalar_select %p193, %s23, 1
          %s195 = scalar_lea.vmem %s0, %s194
        $region24: #{tpu_custom_call.1} parent=19 // pred_fallthru
          _
        // Predicated region
        $region25: #{tpu_custom_call.1} parent=19 // pred_check
          %p196 = pneg %p76
        $region26: #{tpu_custom_call.1} parent=19 // pred_check_branch
          %198 = sbr.rel (%p196) target = $region28
        $region27: #{tpu_custom_call.1} parent=19 // pred_region
          %s199 = sand.u32 %s66, 1
          %s200 = scalar_lea.sflag [#allocation6], %s199
          %s201 = sand.u32 %s66, 1
          %s202 = smul.addr %s201, 8
          %s203 = scalar_lea.vmem [#allocation5], %s202
          %205 = vsyncadd %s200, 0
          %s206 = smul.addr %s24, 2
          %s207 = smul.addr %s23, 2
          %s208 = sadd.s32 %s206, %s207
          %s209 = smul.addr %s208, 4
          %s210 = scalar_lea.hbm %s1, %s209
          %s212 = sshll.u32 %s210, 4
          %s213 = int_to_ptr.hbm [resolvable:$true] %s212
          %s214 = sshll.u32 %s203, 4
          %s215 = int_to_ptr.vmem [resolvable:$true] %s214
          %217 = dma.hbm_to_vmem [thread:$0]  %s213, 128, %s215, %s200
        $region28: #{tpu_custom_call.1} parent=19 // pred_fallthru
          _
        // Predicated region
        $region29: #{tpu_custom_call.1} parent=19 // pred_check
          %p218 = pneg %p104
        $region30: #{tpu_custom_call.1} parent=19 // pred_check_branch
          %220 = sbr.rel (%p218) target = $region32
        $region31: #{tpu_custom_call.1} parent=19 // pred_region
          %s221 = sand.u32 %s16, 1
          %s222 = scalar_lea.sflag [#allocation8], %s221
          %s223 = sand.u32 %s94, 1
          %s224 = smul.addr %s223, 4
          %s225 = scalar_lea.vmem [#allocation7], %s224
          %227 = vsyncadd %s222, 0
          %s228 = smul.addr %s24, 2
          %s229 = smul.addr %s23, 2
          %s230 = sadd.s32 %s228, %s229
          %s231 = smul.addr %s230, 2
          %s232 = scalar_lea.hbm %s2, %s231
          %s234 = sshll.u32 %s232, 4
          %s235 = int_to_ptr.hbm [resolvable:$true] %s234
          %s236 = sshll.u32 %s225, 4
          %s237 = int_to_ptr.vmem [resolvable:$true] %s236
          %239 = dma.hbm_to_vmem [thread:$0]  %s235, 64, %s237, %s222
        $region32: #{tpu_custom_call.1} parent=19 // pred_fallthru
          _
      $region20: #{tpu_custom_call.1} parent=5 // pred_fallthru
        _
      %p240 = scmp.le.s32.totalorder 1, %s16
      %p241 = scmp.lt.s32.totalorder %s16, 3
      %p242 = pnand %p240, %p241
      %p243 = pneg %p242
      // Predicated region
      $region33: #{tpu_custom_call.1} parent=5 // pred_check
        _
      $region34: #{tpu_custom_call.1} parent=5 // pred_check_branch
        %245 = sbr.rel (%p242) target = $region36
      $region35: #{tpu_custom_call.1} parent=5 // pred_region
        %s246 = ssub.s32 %s16, 1
        %s247 = sand.u32 %s69, 1
        %s248 = scalar_lea.sflag [#allocation6], %s247
        %s249 = sand.u32 %s69, 1
        %s250 = smul.addr %s249, 8
        %s251 = scalar_lea.vmem [#allocation5], %s250
        // Predicated region
        $region37: #{tpu_custom_call.1} parent=35 // pred_check
          %p252 = pneg %p82
        $region38: #{tpu_custom_call.1} parent=35 // pred_check_branch
          %254 = sbr.rel (%p252) target = $region40
        $region39: #{tpu_custom_call.1} parent=35 // pred_region
          %256 = dma.done %s248, 128
        $region40: #{tpu_custom_call.1} parent=35 // pred_fallthru
          _
        %s257 = sand.u32 %s21, 1
        %s258 = scalar_lea.sflag [#allocation8], %s257
        %s259 = sand.u32 %s97, 1
        %s260 = smul.addr %s259, 4
        %s261 = scalar_lea.vmem [#allocation7], %s260
        // Predicated region
        $region41: #{tpu_custom_call.1} parent=35 // pred_check
          %p262 = pneg %p110
        $region42: #{tpu_custom_call.1} parent=35 // pred_check_branch
          %264 = sbr.rel (%p262) target = $region44
        $region43: #{tpu_custom_call.1} parent=35 // pred_region
          %266 = dma.done %s258, 64
        $region44: #{tpu_custom_call.1} parent=35 // pred_fallthru
          _
        // Predicated region
        $region45: #{tpu_custom_call.1} parent=35 // pred_check
          %p267 = pneg %p131
        $region46: #{tpu_custom_call.1} parent=35 // pred_check_branch
          %269 = sbr.rel (%p267) target = $region48
        $region47: #{tpu_custom_call.1} parent=35 // pred_region
          %271 = dma.done [#allocation8], 4096
        $region48: #{tpu_custom_call.1} parent=35 // pred_fallthru
          _
        %p272 = scmp.lt.s32.totalorder %s25, 1
        %s273 = scalar_select %p272, %s25, 1
        %s274 = scalar_lea.vmem %s0, %s273
        %p275 = pneg %p54
        %p276 = pneg %p51
        %s277 = sand.u32 %s69, 1
        %s278 = scalar_lea.sflag [#allocation6], %s277
        %s279 = sand.u32 %s69, 1
        %s280 = smul.addr %s279, 8
        %s281 = scalar_lea.vmem [#allocation5], %s280
        %p282 = pneg %p82
        %p283 = pneg %p79
        %s284 = sand.u32 %s21, 1
        %s285 = scalar_lea.sflag [#allocation8], %s284
        %s286 = sand.u32 %s97, 1
        %s287 = smul.addr %s286, 4
        %s288 = scalar_lea.vmem [#allocation7], %s287
        %p289 = pneg %p110
        %p290 = pneg %p107
        %p291 = pneg %p131
        %p292 = pneg %p128
        %p293 = pneg %p157
        %p294 = pneg %p154
        %p295 = scmp.lt.s32.totalorder %s25, 1
        %s296 = scalar_select %p295, %s25, 1
        %s297 = scalar_lea.vmem %s4, %s296
        %p298 = scmp.lt.s32.totalorder %s25, 1
        %s299 = scalar_select %p298, %s25, 1
        %s300 = scalar_lea.vmem %s0, %s299
        %p301 = scmp.lt.s32.totalorder %s25, 1
        %s302 = scalar_select %p301, %s25, 1
        %s303 = scalar_lea.vmem %s4, %s302
        %p304 = scmp.eq.s32.totalorder %s26, 0
        // Predicated region
        $region49: #{tpu_custom_call.1} parent=35 // pred_check
          %p305 = pneg %p304
        $region50: #{tpu_custom_call.1} parent=35 // pred_check_branch
          %307 = sbr.rel (%p305) target = $region52
        $region51: #{tpu_custom_call.1} parent=35 // pred_region
          %vm308 = vcmask 0
          %309 = vst.msk [vmem:[%s303] sm:$0x1] %vm308, 0.0
          %310 = vst.msk [vmem:[#allocation2] sm:$0x1] %vm308, 0.0
          %v311 = vlaneseq
          %v312 = vshrl.u32 %v311, 7
          %v313 = vlaneseq
          %v314 = vand.u32 %v313, 127
          %v315 = vadd.s32 %v314, 128
          %v316 = vmul.u32 %v312, 256
          %v317 = vadd.s32 %v316, %v314
          %v318 = vadd.s32 %v316, %v315
          %v319 = vadd.s32 %v317, 1
          %v320 = vadd.s32 %v318, 1
          %v321 = vcvt.s32.f32 %v319
          %v322 = vcvt.s32.f32 %v320
          %v325 = vrot.slane %v322, 4
          %vm326 = vcmask 1043456
          %v327 = vsel %vm326, %v321, %v325
          %329 = vst [vmem:[#allocation4] sm:$0xff] %v327
        $region52: #{tpu_custom_call.1} parent=35 // pred_fallthru
          _
        %v330 = vld [vmem:[%s251] sm:$0xff]
        %v331 = vld [vmem:[%s261] sm:$0xf]
        %v332 = vunpack.c.l.bf16 %v331
        %v333 = vld [vmem:[%s300] sm:$0x1]
        %v334 = vsub.f32 1024.0, %v333
        %v335 = vld [vmem:[#allocation9] sm:$0xff]
        %v336 = vld [vmem:[#allocation9 + $0x8] sm:$0xff]
        %v337 = vld [vmem:[#allocation9 + $0x10] sm:$0xff]
        %v338 = vld [vmem:[#allocation9 + $0x18] sm:$0xff]
        %v339 = vld [vmem:[#allocation9 + $0x20] sm:$0xff]
        %v340 = vld [vmem:[#allocation9 + $0x28] sm:$0xff]
        %v341 = vld [vmem:[#allocation9 + $0x30] sm:$0xff]
        %v342 = vld [vmem:[#allocation9 + $0x38] sm:$0xff]
        %v343 = vld [vmem:[#allocation9 + $0x40] sm:$0xff]
        %v344 = vld [vmem:[#allocation9 + $0x48] sm:$0xff]
        %v345 = vld [vmem:[#allocation9 + $0x50] sm:$0xff]
        %v346 = vld [vmem:[#allocation9 + $0x58] sm:$0xff]
        %v347 = vld [vmem:[#allocation9 + $0x60] sm:$0xff]
        %v348 = vld [vmem:[#allocation9 + $0x68] sm:$0xff]
        %v349 = vld [vmem:[#allocation9 + $0x70] sm:$0xff]
        %v350 = vld [vmem:[#allocation9 + $0x78] sm:$0xff]
        %v351 = vld [vmem:[#allocation9 + $0x80] sm:$0xff]
        %v352 = vld [vmem:[#allocation9 + $0x88] sm:$0xff]
        %v353 = vld [vmem:[#allocation9 + $0x90] sm:$0xff]
        %v354 = vld [vmem:[#allocation9 + $0x98] sm:$0xff]
        %v355 = vld [vmem:[#allocation9 + $0xa0] sm:$0xff]
        %v356 = vld [vmem:[#allocation9 + $0xa8] sm:$0xff]
        %v357 = vld [vmem:[#allocation9 + $0xb0] sm:$0xff]
        %v358 = vld [vmem:[#allocation9 + $0xb8] sm:$0xff]
        %v359 = vld [vmem:[#allocation9 + $0xc0] sm:$0xff]
        %v360 = vld [vmem:[#allocation9 + $0xc8] sm:$0xff]
        %v361 = vld [vmem:[#allocation9 + $0xd0] sm:$0xff]
        %v362 = vld [vmem:[#allocation9 + $0xd8] sm:$0xff]
        %v363 = vld [vmem:[#allocation9 + $0xe0] sm:$0xff]
        %v364 = vld [vmem:[#allocation9 + $0xe8] sm:$0xff]
        %v365 = vld [vmem:[#allocation9 + $0xf0] sm:$0xff]
        %v366 = vld [vmem:[#allocation9 + $0xf8] sm:$0xff]
        %368 = vst [vmem:[#allocation1] ss:$4 sm:$0xff] %v331
        %v369 = vld.sshfl [vmem:[#allocation1] sm:$0xff pattern:$0x73625140]
        %v370 = vld.sshfl [vmem:[#allocation1 + $0x8] sm:$0xff pattern:$0x73625140]
        %v405 = vunpack.c.l.b16 %v335
        %v406 = vunpack.c.h.b16 %v335
        %v407 = vunpack.c.l.b16 %v336
        %v408 = vunpack.c.h.b16 %v336
        %v409 = vunpack.c.l.b16 %v337
        %v410 = vunpack.c.h.b16 %v337
        %v411 = vunpack.c.l.b16 %v338
        %v412 = vunpack.c.h.b16 %v338
        %v413 = vunpack.c.l.b16 %v339
        %v414 = vunpack.c.h.b16 %v339
        %v415 = vunpack.c.l.b16 %v340
        %v416 = vunpack.c.h.b16 %v340
        %v417 = vunpack.c.l.b16 %v341
        %v418 = vunpack.c.h.b16 %v341
        %v419 = vunpack.c.l.b16 %v342
        %v420 = vunpack.c.h.b16 %v342
        %v421 = vunpack.c.l.b16 %v343
        %v422 = vunpack.c.h.b16 %v343
        %v423 = vunpack.c.l.b16 %v344
        %v424 = vunpack.c.h.b16 %v344
        %v425 = vunpack.c.l.b16 %v345
        %v426 = vunpack.c.h.b16 %v345
        %v427 = vunpack.c.l.b16 %v346
        %v428 = vunpack.c.h.b16 %v346
        %v429 = vunpack.c.l.b16 %v347
        %v430 = vunpack.c.h.b16 %v347
        %v431 = vunpack.c.l.b16 %v348
        %v432 = vunpack.c.h.b16 %v348
        %v433 = vunpack.c.l.b16 %v349
        %v434 = vunpack.c.h.b16 %v349
        %v435 = vunpack.c.l.b16 %v350
        %v436 = vunpack.c.h.b16 %v350
        %v437 = vunpack.c.l.b16 %v351
        %v438 = vunpack.c.h.b16 %v351
        %v439 = vunpack.c.l.b16 %v352
        %v440 = vunpack.c.h.b16 %v352
        %v441 = vunpack.c.l.b16 %v353
        %v442 = vunpack.c.h.b16 %v353
        %v443 = vunpack.c.l.b16 %v354
        %v444 = vunpack.c.h.b16 %v354
        %v445 = vunpack.c.l.b16 %v355
        %v446 = vunpack.c.h.b16 %v355
        %v447 = vunpack.c.l.b16 %v356
        %v448 = vunpack.c.h.b16 %v356
        %v449 = vunpack.c.l.b16 %v357
        %v450 = vunpack.c.h.b16 %v357
        %v451 = vunpack.c.l.b16 %v358
        %v452 = vunpack.c.h.b16 %v358
        %v453 = vunpack.c.l.b16 %v359
        %v454 = vunpack.c.h.b16 %v359
        %v455 = vunpack.c.l.b16 %v360
        %v456 = vunpack.c.h.b16 %v360
        %v457 = vunpack.c.l.b16 %v361
        %v458 = vunpack.c.h.b16 %v361
        %v459 = vunpack.c.l.b16 %v362
        %v460 = vunpack.c.h.b16 %v362
        %v461 = vunpack.c.l.b16 %v363
        %v462 = vunpack.c.h.b16 %v363
        %v463 = vunpack.c.l.b16 %v364
        %v464 = vunpack.c.h.b16 %v364
        %v465 = vunpack.c.l.b16 %v365
        %v466 = vunpack.c.h.b16 %v365
        %v467 = vunpack.c.l.b16 %v366
        %v468 = vunpack.c.h.b16 %v366
        %v469 = vpack.c.b16 %v407, %v405
        %v470 = vpack.c.b16 %v408, %v406
        %v471 = vpack.c.b16 %v411, %v409
        %v472 = vpack.c.b16 %v412, %v410
        %v473 = vpack.c.b16 %v415, %v413
        %v474 = vpack.c.b16 %v416, %v414
        %v475 = vpack.c.b16 %v419, %v417
        %v476 = vpack.c.b16 %v420, %v418
        %v477 = vpack.c.b16 %v423, %v421
        %v478 = vpack.c.b16 %v424, %v422
        %v479 = vpack.c.b16 %v427, %v425
        %v480 = vpack.c.b16 %v428, %v426
        %v481 = vpack.c.b16 %v431, %v429
        %v482 = vpack.c.b16 %v432, %v430
        %v483 = vpack.c.b16 %v435, %v433
        %v484 = vpack.c.b16 %v436, %v434
        %v485 = vpack.c.b16 %v439, %v437
        %v486 = vpack.c.b16 %v440, %v438
        %v487 = vpack.c.b16 %v443, %v441
        %v488 = vpack.c.b16 %v444, %v442
        %v489 = vpack.c.b16 %v447, %v445
        %v490 = vpack.c.b16 %v448, %v446
        %v491 = vpack.c.b16 %v451, %v449
        %v492 = vpack.c.b16 %v452, %v450
        %v493 = vpack.c.b16 %v455, %v453
        %v494 = vpack.c.b16 %v456, %v454
        %v495 = vpack.c.b16 %v459, %v457
        %v496 = vpack.c.b16 %v460, %v458
        %v497 = vpack.c.b16 %v463, %v461
        %v498 = vpack.c.b16 %v464, %v462
        %v499 = vpack.c.b16 %v467, %v465
        %v500 = vpack.c.b16 %v468, %v466
        %533 = vmatpush.bf16.msra.mxu0 %v483
        %534 = vmatpush.bf16.msra.mxu0 %v481
        %535 = vmatpush.bf16.msra.mxu0 %v479
        %536 = vmatpush.bf16.msra.mxu0 %v477
        %537 = vmatpush.bf16.msra.mxu0 %v475
        %538 = vmatpush.bf16.msra.mxu0 %v473
        %539 = vmatpush.bf16.msra.mxu0 %v471
        %540 = vmatpush.bf16.msra.mxu0 %v469
        %541 = vmatmul.bf16.gmra.mxu0 %v369
        %v542 = vpop.f32.mrf.mxu0
        %v543 = vadd.f32 0.0, %v542
        %v544 = vpop.f32.mrf.mxu0
        %545 = vdwg.mxu0
        %546 = vmatpush.bf16.msra.mxu0 %v499
        %547 = vmatpush.bf16.msra.mxu0 %v497
        %548 = vmatpush.bf16.msra.mxu0 %v495
        %549 = vmatpush.bf16.msra.mxu0 %v493
        %550 = vmatpush.bf16.msra.mxu0 %v491
        %551 = vmatpush.bf16.msra.mxu0 %v489
        %552 = vmatpush.bf16.msra.mxu0 %v487
        %553 = vmatpush.bf16.msra.mxu0 %v485
        %554 = vmatmul.bf16.gmra.mxu0 %v370
        %v555 = vpop.f32.mrf.mxu0
        %v556 = vadd.f32 %v543, %v555
        %v557 = vpop.f32.mrf.mxu0
        %558 = vdwg.mxu0
        %559 = vmatpush.bf16.msra.mxu0 %v484
        %560 = vmatpush.bf16.msra.mxu0 %v482
        %561 = vmatpush.bf16.msra.mxu0 %v480
        %562 = vmatpush.bf16.msra.mxu0 %v478
        %563 = vmatpush.bf16.msra.mxu0 %v476
        %564 = vmatpush.bf16.msra.mxu0 %v474
        %565 = vmatpush.bf16.msra.mxu0 %v472
        %566 = vmatpush.bf16.msra.mxu0 %v470
        %567 = vmatmul.bf16.gmra.mxu0 %v369
        %v568 = vpop.f32.mrf.mxu0
        %v569 = vadd.f32 0.0, %v568
        %v570 = vpop.f32.mrf.mxu0
        %571 = vdwg.mxu0
        %572 = vmatpush.bf16.msra.mxu0 %v500
        %573 = vmatpush.bf16.msra.mxu0 %v498
        %574 = vmatpush.bf16.msra.mxu0 %v496
        %575 = vmatpush.bf16.msra.mxu0 %v494
        %576 = vmatpush.bf16.msra.mxu0 %v492
        %577 = vmatpush.bf16.msra.mxu0 %v490
        %578 = vmatpush.bf16.msra.mxu0 %v488
        %579 = vmatpush.bf16.msra.mxu0 %v486
        %580 = vmatmul.bf16.gmra.mxu0 %v370
        %v581 = vpop.f32.mrf.mxu0
        %v582 = vadd.f32 %v569, %v581
        %v583 = vpop.f32.mrf.mxu0
        %584 = vdwg.mxu0
        %v585 = vld [vmem:[#allocation2] sm:$0x1]
        %vm586 = vcmask 0
        %587 = vst.msk [vmem:[#allocation3] sm:$0x1] %vm586, %v585
        %589 = vrot.lane.b32.xlu0 %v582, 1
        %v590 = vpop.permute.xlu0 %589
        %v592 = vadd.f32 %v585, %v590
        %593 = vst.msk [vmem:[#allocation3 + $0x1] sm:$0x1] %vm586, %v592
        %594 = vst [vmem:[#allocation1] sm:$0xff] %v582
        %s595 = scalar_lea.vmem [#allocation1], 1
        %v596 = vld [vmem:[%s595] ss:$9 sm:$0xff]
        %597 = vrot.lane.b32.xlu0 %v596, 1
        %v598 = vpop.permute.xlu0 %597
        %v600 = vadd.f32 %v592, %v598
        %601 = vst.msk [vmem:[#allocation3 + $0x2] sm:$0x1] %vm586, %v600
        %602 = vst [vmem:[#allocation1] sm:$0xff] %v582
        %s603 = scalar_lea.vmem [#allocation1], 2
        %v604 = vld [vmem:[%s603] ss:$9 sm:$0xff]
        %605 = vrot.lane.b32.xlu0 %v604, 1
        %v606 = vpop.permute.xlu0 %605
        %v608 = vadd.f32 %v600, %v606
        %609 = vst.msk [vmem:[#allocation3 + $0x3] sm:$0x1] %vm586, %v608
        %610 = vst [vmem:[#allocation1] sm:$0xff] %v582
        %s611 = scalar_lea.vmem [#allocation1], 3
        %v612 = vld [vmem:[%s611] ss:$9 sm:$0xff]
        %613 = vrot.lane.b32.xlu0 %v612, 1
        %v614 = vpop.permute.xlu0 %613
        %v616 = vadd.f32 %v608, %v614
        %617 = vst.msk [vmem:[#allocation2] sm:$0x1] %vm586, %v616
        %v618 = vld [vmem:[#allocation4] sm:$0xff]
        %s619 = smul.u32 %s26, 1024
        %s620 = scvt.s32.f32 %s619
        %v621 = vstv %s620
        %v622 = vadd.f32 %v618, %v621
        %v623 = vld [vmem:[#allocation3] sm:$0xf]
        %625 = vset.pattern.permute.xlu0 0
        %626 = vperm.xlu0 %625, %v623
        %v627 = vpop.permute.xlu0 %626
        %v629 = vadd.f32 %v627, %v556
        %v630 = vadd.f32 %v627, %v582
        %632 = vst [vmem:[#allocation1] ss:$2 sm:$0xff] %v332
        %v633 = vld.sshfl [vmem:[#allocation1] sm:$0xff pattern:$0x75316420]
        %v634 = vld.sshfl [vmem:[#allocation1 + $0x8] sm:$0xff pattern:$0x75316420]
        %v637 = vsub.f32 %v629, %v633
        %v638 = vsub.f32 %v630, %v634
        %v640 = vperm.slane %v333, 0
        %641 = vset.pattern.permute.xlu0 0
        %642 = vperm.xlu0 %641, %v640
        %v643 = vpop.permute.xlu0 %642
        %v645 = vadd.f32 %v643, %v622
        %v648 = vrot.slane %v630, 4
        %vm649 = vcmask 1043456
        %v650 = vsel %vm649, %v629, %v648
        %v652 = vsub.f32 %v645, %v650
        %v653 = vsub.f32 %v622, 1.0
        %v654 = vadd.f32 %v643, %v653
        %v657 = vrot.slane %v638, 4
        %v658 = vsel %vm649, %v637, %v657
        %v660 = vsub.f32 %v654, %v658
        %v661 = vmax.f32 %v660, 1.0
        %v663 = vperm.slane %v334, 0
        %664 = vset.pattern.permute.xlu0 0
        %665 = vperm.xlu0 %664, %v663
        %v666 = vpop.permute.xlu0 %665
        %v668 = vadd.f32 %v666, %v629
        %v669 = vadd.f32 %v666, %v630
        %v670 = vadd.f32 %v666, %v637
        %v671 = vadd.f32 %v666, %v638
        %v672 = vmax.f32 %v670, 1.0
        %v673 = vmax.f32 %v671, 1.0
        %v674 = vmul.f32 %v622, %v661
        %v675 = vmul.f32 %v653, %v652
        %v676 = vsub.f32 %v674, %v675
        %v677 = vmul.f32 %v652, %v661
        %v678 = vrcp.pop %v677
        %v679 = vmul.f32 %v677, %v678
        %v680 = vsub.f32 1.0, %v679
        %v681 = vmul.f32 %v678, %v680
        %v682 = vadd.f32 %v678, %v681
        %vm683 = vweird.f32 %v677
        %vm684 = vweird.f32 %v678
        %vm685 = vmor %vm683, %vm684
        %v686 = vsel %vm685, %v678, %v682
        %v687 = vand.u32 2147483647, %v677
        %vm688 = vcmp.eq.f32.partialorder %v687, 8.507059e+37
        %v689 = vand.u32 %v677, 2147483648
        %v690 = vor.u32 1.1754944e-38, %v689
        %v691 = vsel %vm688, %v690, %v686
        %v692 = vmul.f32 %v676, %v691
        %v695 = vrot.slane %v673, 4
        %v696 = vsel %vm649, %v672, %v695
        %v698 = vmul.f32 %v622, %v696
        %v701 = vrot.slane %v669, 4
        %v702 = vsel %vm649, %v668, %v701
        %v704 = vmul.f32 %v653, %v702
        %v705 = vsub.f32 %v698, %v704
        %v706 = vmul.f32 %v668, %v672
        %v707 = vmul.f32 %v669, %v673
        %v710 = vrot.slane %v707, 4
        %v711 = vsel %vm649, %v706, %v710
        %v713 = vrcp.pop %v711
        %v714 = vmul.f32 %v711, %v713
        %v715 = vsub.f32 1.0, %v714
        %v716 = vmul.f32 %v713, %v715
        %v717 = vadd.f32 %v713, %v716
        %vm718 = vweird.f32 %v711
        %vm719 = vweird.f32 %v713
        %vm720 = vmor %vm718, %vm719
        %v721 = vsel %vm720, %v713, %v717
        %v722 = vand.u32 2147483647, %v711
        %vm723 = vcmp.eq.f32.partialorder %v722, 8.507059e+37
        %v724 = vand.u32 %v711, 2147483648
        %v725 = vor.u32 1.1754944e-38, %v724
        %v726 = vsel %vm723, %v725, %v721
        %v727 = vmul.f32 %v705, %v726
        %v728 = vmax.f32 %v330, 0.0
        %v729 = vadd.f32 %v692, %v727
        %v730 = vmul.f32 %v728, %v729
        %vm731 = vcmp.le.f32.partialorder %v622, 1024.0
        %v732 = vsel %vm731, %v730, 0.0
        %734 = vst [vmem:[#allocation1] ss:$2 sm:$0xff] %v732
        %v735 = vld.sshfl [vmem:[#allocation1] sm:$0xff pattern:$0x75316420]
        %v736 = vld.sshfl [vmem:[#allocation1 + $0x8] sm:$0xff pattern:$0x75316420]
        %v739 = vsel %vm649, %v735, 0.0
        %v740 = vsel %vm649, %v736, 0.0
        %v741 = vadd.f32 %v739, %v740
        %742 = vadd.xlane.f32.xlu0 %v741
        %v743 = vpop.xlane.xlu0 %742
        %v744 = vsel %vm649, %v743, 0.0
        %v745 = vrot.slane %v744, 4
        %v746 = vadd.f32 %v744, %v745
        %v747 = vrot.slane %v746, 2
        %v748 = vadd.f32 %v746, %v747
        %v749 = vrot.slane %v748, 1
        %v750 = vadd.f32 %v748, %v749
        %v751 = vld [vmem:[%s303] sm:$0x1]
        %v752 = vadd.f32 %v751, %v750
        %753 = vst.msk [vmem:[%s303] sm:$0x1] %vm586, %v752
        %p754 = scmp.lt.s32.totalorder %s25, 1
        %s755 = scalar_select %p754, %s25, 1
        %s756 = scalar_lea.vmem %s4, %s755
        // Predicated region
        $region53: #{tpu_custom_call.1} parent=35 // pred_check
          %p757 = pneg %p154
        $region54: #{tpu_custom_call.1} parent=35 // pred_check_branch
          %759 = sbr.rel (%p757) target = $region56
        $region55: #{tpu_custom_call.1} parent=35 // pred_region
          _
        $region56: #{tpu_custom_call.1} parent=35 // pred_fallthru
          _
      $region36: #{tpu_custom_call.1} parent=5 // pred_fallthru
        _
      %p760 = scmp.le.s32.totalorder 2, %s16
      // Predicated region
      $region57: #{tpu_custom_call.1} parent=5 // pred_check
        %p761 = pneg %p760
      $region58: #{tpu_custom_call.1} parent=5 // pred_check_branch
        %763 = sbr.rel (%p761) target = $region60
      $region59: #{tpu_custom_call.1} parent=5 // pred_region
        %s764 = ssub.s32 %s16, 2
        // Predicated region
        $region61: #{tpu_custom_call.1} parent=59 // pred_check
          %p765 = pneg %p160
        $region62: #{tpu_custom_call.1} parent=59 // pred_check_branch
          %767 = sbr.rel (%p765) target = $region64
        $region63: #{tpu_custom_call.1} parent=59 // pred_region
          %p768 = scmp.lt.s32.totalorder %s27, 1
          %s769 = scalar_select %p768, %s27, 1
          %s770 = scalar_lea.vmem %s4, %s769
        $region64: #{tpu_custom_call.1} parent=59 // pred_fallthru
          _
      $region60: #{tpu_custom_call.1} parent=5 // pred_fallthru
        _
    $region6: #{tpu_custom_call.1} parent=1 // loop_footer
      %s20 = sadd.s32 1, %s16
    $region7: #{tpu_custom_call.1} parent=1 // loop_footer_branch
      %15 = sbr.rel target = $region3
    $region8: #{tpu_custom_call.1} parent=1 // loop_exit
      _
    %771 = vsyncpa [#allocation6], 1
    %s772 = scalar_lea.sflag [#allocation6], 1
    %773 = vsyncpa %s772, 1
    %774 = vsyncpa [#allocation8], 1
    %s775 = scalar_lea.sflag [#allocation8], 1
    %776 = vsyncpa %s775, 1

</llo_original>
